<compile_context>
chip_gen: v7x
topology: tpu7x:2x2x1
jax: 0.10.0
libtpu: 0.0.40
codegen_flags: <defaults>
</compile_context>

<pallas_src>
import functools

import jax
import jax.numpy as jnp
from jax.experimental import pallas as pl
from jax.experimental.pallas import tpu as pltpu

_LANE = 128          # class axis padded to a multiple of the 128-lane width
_PAD_NEG = -1e30     # finite "-inf": exp underflows to 0, log-softmax stays finite


def _round_up(x, m):
    return (x + m - 1) // m * m


def _label_smoothing_kernel(x_ref, tgt_ref, msk_ref, loss_ref, *,
                            confidence, smoothing_value, num_classes):
    x = x_ref[...].astype(jnp.float32)                          # (TB, Cp)

    # numerically stable log_softmax along the class (lane) axis
    m = jnp.max(x, axis=-1, keepdims=True)                      # (TB, 1)
    shifted = x - m
    lse = jnp.log(jnp.sum(jnp.exp(shifted), axis=-1, keepdims=True))
    neg_logp = lse - shifted                                    # = -log_softmax(x)

    # fused: scatter(confidence at target) + masked_fill(0) + multiply
    col = jax.lax.broadcasted_iota(jnp.int32, x.shape, 1)       # (TB, Cp)
    tgt = tgt_ref[...]                                          # (TB, 1) int32
    prob = jnp.where(col == tgt,
                     jnp.float32(confidence),
                     jnp.float32(smoothing_value))
    drop = jnp.logical_or(msk_ref[...] != 0, col >= num_classes)
    loss_ref[...] = jnp.where(drop, 0.0, prob * neg_logp).astype(loss_ref.dtype)


@functools.partial(
    jax.jit,
    static_argnames=("label_smoothing", "ignore_index", "out_dtype",
                     "tile_vmem_budget_bytes"))
def label_smoothing_loss(output, target, mask, *, label_smoothing=0.1,
                         ignore_index=-100, out_dtype=jnp.float32,
                         tile_vmem_budget_bytes=16 * 1024 * 1024):
    """output: (B, C) float32/bfloat16 logits; target: (B,) int; mask: (B,)/(B,1) bool.

    Returns -model_prob * log_softmax(output), shape (B, C), reduction='none',
    exactly like the PyTorch module. `ignore_index` is kept for signature
    parity only; like the PyTorch forward, it is not used directly — the
    caller's `mask` carries that information.
    """
    assert 0.0 < label_smoothing <= 1.0
    R, C = output.shape
    confidence = 1.0 - label_smoothing
    smoothing_value = label_smoothing / C          # matches torch: ls / output.size(-1)

    out_dtype = jnp.dtype(out_dtype)
    in_dtype = jnp.dtype(output.dtype)
    sublane = 16 if in_dtype.itemsize == 2 else 8  # bf16 packs 2 rows / sublane

    Cp = _round_up(C, _LANE)

    # pick the row tile so double-buffered (input + output) tiles fit the budget
    bytes_per_row = 2 * Cp * (in_dtype.itemsize + out_dtype.itemsize)
    tb = (tile_vmem_budget_bytes // bytes_per_row) // sublane * sublane
    tb = max(sublane, tb)
    tb = min(tb, _round_up(R, sublane))
    Rp = _round_up(R, tb)

    x_p = jnp.pad(output, ((0, Rp - R), (0, Cp - C)), constant_values=_PAD_NEG)
    tgt_p = jnp.pad(target.reshape(R, 1).astype(jnp.int32), ((0, Rp - R), (0, 0)))
    msk_p = jnp.pad(mask.reshape(R, 1).astype(jnp.int32), ((0, Rp - R), (0, 0)))

    kernel = functools.partial(_label_smoothing_kernel,
                               confidence=confidence,
                               smoothing_value=smoothing_value,
                               num_classes=C)

    # reuse the padded logits HBM buffer for the loss when dtypes allow it
    aliases = {0: 0} if in_dtype == out_dtype else {}

    loss_p = pl.pallas_call(
        kernel,
        out_shape=jax.ShapeDtypeStruct((Rp, Cp), out_dtype),
        grid=(Rp // tb,),
        in_specs=[
            pl.BlockSpec((tb, Cp), lambda i: (i, 0)),   # logits tile
            pl.BlockSpec((tb, 1), lambda i: (i, 0)),    # target
            pl.BlockSpec((tb, 1), lambda i: (i, 0)),    # mask
        ],
        out_specs=pl.BlockSpec((tb, Cp), lambda i: (i, 0)),
        compiler_params=pltpu.CompilerParams(
            dimension_semantics=("parallel",),
            vmem_limit_bytes=64 * 1024 * 1024),
        input_output_aliases=aliases,
    )(x_p, tgt_p, msk_p)

    return loss_p[:R, :C]


def _reference(output, target, mask, label_smoothing):
    # pure-JAX reference mirroring the PyTorch forward
    B, C = output.shape
    logp = jax.nn.log_softmax(output.astype(jnp.float32), axis=-1)
    smoothing_value = label_smoothing / C
    confidence = 1.0 - label_smoothing
    model_prob = jnp.full((B, C), smoothing_value, dtype=jnp.float32)
    model_prob = model_prob.at[jnp.arange(B), target].set(confidence)
    model_prob = jnp.where(mask.reshape(B, 1), 0.0, model_prob)
    return -model_prob * logp


if __name__ == "__main__":
    key = jax.random.PRNGKey(0)
    k1, k2 = jax.random.split(key)

    B, C = 8, 32                 # batch_size x n_classes
    label_smoothing = 0.1
    ignore_index = 0

    output = jax.random.normal(k1, (B, C), dtype=jnp.float32)
    target = jax.random.randint(k2, (B,), 0, C, dtype=jnp.int32)
    # typical BARTNER usage: mask out padding positions (target == pad)
    mask = (target == ignore_index)

    loss = label_smoothing_loss(output, target, mask,
                                label_smoothing=label_smoothing,
                                ignore_index=ignore_index)
    loss = jax.block_until_ready(loss)

    ref = _reference(output, target, mask, label_smoothing)
    assert loss.shape == (B, C)
    assert jnp.allclose(loss, ref, atol=1e-5, rtol=1e-5), "mismatch vs reference"

    print("KERNEL_OK")
</pallas_src>

<mosaic_0001>
module attributes {stable_mosaic.version = 11 : i64} {
  func.func @_label_smoothing_kernel(%arg0: i32, %arg1: memref<8x128xf32, #tpu.memory_space<vmem>>, %arg2: memref<8x1xi32, #tpu.memory_space<vmem>>, %arg3: memref<8x1xi32, #tpu.memory_space<vmem>>, %arg4: memref<8x128xf32, #tpu.memory_space<vmem>>) attributes {dimension_semantics = [#tpu.dimension_semantics<parallel>], iteration_bounds = array<i64: 1>, scalar_prefetch = 0 : i64, scratch_operands = 0 : i64, tpu.core_type = #tpu.core_type<tc>, window_params = [{transform_indices = @transform_0, window_bounds = array<i64: 8, 128>}, {transform_indices = @transform_1, window_bounds = array<i64: 8, 1>}, {transform_indices = @transform_2, window_bounds = array<i64: 8, 1>}, {transform_indices = @transform_3, window_bounds = array<i64: 8, 128>}]} {
    %c0 = arith.constant 0 : index
    %c0_0 = arith.constant 0 : index
    %0 = vector.load %arg1[%c0, %c0_0] : memref<8x128xf32, #tpu.memory_space<vmem>>, vector<8x128xf32>
    %cst = arith.constant dense<0xFF800000> : vector<8xf32>
    %1 = vector.multi_reduction <maximumf>, %0, %cst [1] : vector<8x128xf32> to vector<8xf32>
    %2 = vector.shape_cast %1 : vector<8xf32> to vector<8x1xf32>
    %3 = vector.broadcast %2 : vector<8x1xf32> to vector<8x128xf32>
    %4 = arith.subf %0, %3 : vector<8x128xf32>
    %5 = math.exp %4 : vector<8x128xf32>
    %cst_1 = arith.constant dense<0.000000e+00> : vector<8xf32>
    %6 = vector.multi_reduction <add>, %5, %cst_1 [1] : vector<8x128xf32> to vector<8xf32>
    %7 = vector.shape_cast %6 : vector<8xf32> to vector<8x1xf32>
    %8 = math.log %7 : vector<8x1xf32>
    %9 = vector.broadcast %8 : vector<8x1xf32> to vector<8x128xf32>
    %10 = arith.subf %9, %4 : vector<8x128xf32>
    %11 = tpu.iota {dimensions = array<i32: 1>} : vector<8x128xi32>
    %c0_2 = arith.constant 0 : index
    %c0_3 = arith.constant 0 : index
    %12 = vector.load %arg2[%c0_2, %c0_3] : memref<8x1xi32, #tpu.memory_space<vmem>>, vector<8x1xi32>
    %13 = vector.broadcast %12 : vector<8x1xi32> to vector<8x128xi32>
    %14 = arith.cmpi eq, %11, %13 : vector<8x128xi32>
    %cst_4 = arith.constant 0.899999976 : f32
    %cst_5 = arith.constant 3.125000e-03 : f32
    %15 = vector.broadcast %cst_4 : f32 to vector<8x128xf32>
    %16 = vector.broadcast %cst_5 : f32 to vector<8x128xf32>
    %17 = arith.select %14, %15, %16 : vector<8x128xi1>, vector<8x128xf32>
    %c0_6 = arith.constant 0 : index
    %c0_7 = arith.constant 0 : index
    %18 = vector.load %arg3[%c0_6, %c0_7] : memref<8x1xi32, #tpu.memory_space<vmem>>, vector<8x1xi32>
    %c0_i32 = arith.constant 0 : i32
    %19 = vector.broadcast %c0_i32 : i32 to vector<8x1xi32>
    %20 = arith.cmpi ne, %18, %19 : vector<8x1xi32>
    %c32_i32 = arith.constant 32 : i32
    %21 = vector.broadcast %c32_i32 : i32 to vector<8x128xi32>
    %22 = arith.cmpi sge, %11, %21 : vector<8x128xi32>
    %23 = vector.broadcast %20 : vector<8x1xi1> to vector<8x128xi1>
    %24 = arith.ori %23, %22 : vector<8x128xi1>
    %25 = arith.mulf %17, %10 : vector<8x128xf32>
    %cst_8 = arith.constant 0.000000e+00 : f32
    %26 = vector.broadcast %cst_8 : f32 to vector<8x128xf32>
    %27 = arith.select %24, %26, %25 : vector<8x128xi1>, vector<8x128xf32>
    %c0_9 = arith.constant 0 : index
    %c0_10 = arith.constant 0 : index
    %28 = vector.load %arg4[%c0_9, %c0_10] : memref<8x128xf32, #tpu.memory_space<vmem>>, vector<8x128xf32>
    tpu.vector_store %arg4[%c0_9, %c0_10], %27 {strides = array<i32>} : memref<8x128xf32, #tpu.memory_space<vmem>>, vector<8x128xf32>,
    return
  }
  func.func @transform_0(%arg0: i32) -> (i32, i32) {
    %c0_i32 = arith.constant 0 : i32
    %c0_i32_0 = arith.constant 0 : i32
    return %arg0, %c0_i32 : i32, i32
  }
  func.func @transform_1(%arg0: i32) -> (i32, i32) {
    %c0_i32 = arith.constant 0 : i32
    %c0_i32_0 = arith.constant 0 : i32
    return %arg0, %c0_i32 : i32, i32
  }
  func.func @transform_2(%arg0: i32) -> (i32, i32) {
    %c0_i32 = arith.constant 0 : i32
    %c0_i32_0 = arith.constant 0 : i32
    return %arg0, %c0_i32 : i32, i32
  }
  func.func @transform_3(%arg0: i32) -> (i32, i32) {
    %c0_i32 = arith.constant 0 : i32
    %c0_i32_0 = arith.constant 0 : i32
    return %arg0, %c0_i32 : i32, i32
  }
}

</mosaic_0001>

<llo_original>
// kernel: label_smoothing_loss.1
$region0: #{label_smoothing_loss.1}
  #allocation0 [shape = 'u32[]', space=smem, size = 0x4, offset = 0x4, fixed_abs, tag = 'smem constant byte address 0x4 - core index']
  #allocation1 [shape = 'u32[144,128]{1,0:T(1,128)}', space=vmem, size = 0x12000, scoped, tag = 'internal scratch']
  %s0 = inlined_call_operand.hbm [shape: f32[8,128], index: 0, kind: input, shape index: {}, may-alias: {0,3}]
  %s1 = inlined_call_operand.hbm [shape: s32[8,1], index: 1, kind: input, shape index: {}]
  %s2 = inlined_call_operand.hbm [shape: s32[8,1], index: 2, kind: input, shape index: {}]
  %s3 = inlined_call_operand.hbm [shape: f32[8,128], index: 3, kind: output, shape index: {}, may-alias: {0,3}]
  %s4 = sld [smem:[#allocation0]]
  $region34: #{label_smoothing_loss.1} parent=0
    _
  %s6 = ssub.s32 1, %s4
  %s7 = scalar_select 0, %s6, %s4
  $region1: #{label_smoothing_loss.1} parent=0
    #allocation2 [shape = 'u8[4096]{0}', space=vmem, size = 0x1000, scoped, tag = 'input window, operand 0, single buffered']
    #allocation3 [shape = 's32[1]{0}', space=sflag, size = 0x4, scoped, tag = 'scoped memory for label_smoothing_loss.1']
    #allocation4 [shape = 's32[1]{0}', space=sflag, size = 0x4, scoped, tag = 'scoped memory for label_smoothing_loss.1']
    #allocation5 [shape = 'u8[4096]{0}', space=vmem, size = 0x1000, scoped, tag = 'input window, operand 1, single buffered']
    #allocation6 [shape = 's32[1]{0}', space=sflag, size = 0x4, scoped, tag = 'scoped memory for label_smoothing_loss.1']
    #allocation7 [shape = 'u8[4096]{0}', space=vmem, size = 0x1000, scoped, tag = 'input window, operand 2, single buffered']
    #allocation8 [shape = 'u8[4096]{0}', space=vmem, size = 0x1000, scoped, tag = 'output window, operand 0, single buffered']
    %8 = vsyncpa [#allocation3], 0
    %9 = vsyncpa [#allocation6], 0
    %10 = vsyncpa [#allocation4], 0
    // Predicated region
    $region2: #{label_smoothing_loss.1} parent=1 // pred_check
      _
    $region3: #{label_smoothing_loss.1} parent=1 // pred_check_branch
      %12 = sbr.rel (0) target = $region5
    $region4: #{label_smoothing_loss.1} parent=1 // pred_region
      %s14 = ssub.s32 128, 128
      %15 = vsyncadd [#allocation3], %s14
      %s17 = sshll.u32 [#allocation2], 4
      %s18 = int_to_ptr.vmem [resolvable:$true] %s17
      %20 = dma.hbm_to_vmem [thread:$0]  %s0, 128, %s18, [#allocation3]
    $region5: #{label_smoothing_loss.1} parent=1 // pred_fallthru
      _
    // Predicated region
    $region6: #{label_smoothing_loss.1} parent=1 // pred_check
      _
    $region7: #{label_smoothing_loss.1} parent=1 // pred_check_branch
      %22 = sbr.rel (0) target = $region9
    $region8: #{label_smoothing_loss.1} parent=1 // pred_region
      %s24 = ssub.s32 128, 128
      %25 = vsyncadd [#allocation6], %s24
      %s27 = sshll.u32 [#allocation5], 4
      %s28 = int_to_ptr.vmem [resolvable:$true] %s27
      %30 = dma.hbm_to_vmem [thread:$0]  %s1, 128, %s28, [#allocation6]
    $region9: #{label_smoothing_loss.1} parent=1 // pred_fallthru
      _
    // Predicated region
    $region10: #{label_smoothing_loss.1} parent=1 // pred_check
      _
    $region11: #{label_smoothing_loss.1} parent=1 // pred_check_branch
      %32 = sbr.rel (0) target = $region13
    $region12: #{label_smoothing_loss.1} parent=1 // pred_region
      %s34 = ssub.s32 128, 128
      %35 = vsyncadd [#allocation6], %s34
      %s37 = sshll.u32 [#allocation7], 4
      %s38 = int_to_ptr.vmem [resolvable:$true] %s37
      %40 = dma.hbm_to_vmem [thread:$0]  %s2, 128, %s38, [#allocation6]
    $region13: #{label_smoothing_loss.1} parent=1 // pred_fallthru
      _
    // Predicated region
    $region14: #{label_smoothing_loss.1} parent=1 // pred_check
      _
    $region15: #{label_smoothing_loss.1} parent=1 // pred_check_branch
      %42 = sbr.rel (0) target = $region17
    $region16: #{label_smoothing_loss.1} parent=1 // pred_region
      %43 = dma.done [#allocation3], 128
    $region17: #{label_smoothing_loss.1} parent=1 // pred_fallthru
      _
    // Predicated region
    $region18: #{label_smoothing_loss.1} parent=1 // pred_check
      _
    $region19: #{label_smoothing_loss.1} parent=1 // pred_check_branch
      %45 = sbr.rel (0) target = $region21
    $region20: #{label_smoothing_loss.1} parent=1 // pred_region
      %46 = dma.done [#allocation6], 128
    $region21: #{label_smoothing_loss.1} parent=1 // pred_fallthru
      _
    // Predicated region
    $region22: #{label_smoothing_loss.1} parent=1 // pred_check
      _
    $region23: #{label_smoothing_loss.1} parent=1 // pred_check_branch
      %48 = sbr.rel (0) target = $region25
    $region24: #{label_smoothing_loss.1} parent=1 // pred_region
      %49 = dma.done [#allocation6], 128
    $region25: #{label_smoothing_loss.1} parent=1 // pred_fallthru
      _
    %v50 = vld [vmem:[#allocation2] sm:$0xff]
    %51 = vmax.xlane.f32.xlu0 %v50
    %v52 = vpop.xlane.xlu0 %51
    %v53 = vsub.f32 %v50, %v52
    %v54 = vmul.f32 %v53, 1.442695
    %v55 = vpow.pop %v54
    %56 = vadd.xlane.f32.xlu0 %v55
    %v57 = vpop.xlane.xlu0 %56
    %v58 = vlog2.pop %v57
    %v59 = vmul.f32 %v58, 0.6931472
    %v60 = vsub.f32 %v59, %v53
    %v61 = vlaneseq
    %v62 = vand.u32 %v61, 127
    %v63 = vld [vmem:[#allocation5] sm:$0xff]
    %64 = vset.pattern.permute.xlu0 0
    %65 = vperm.xlu0 %64, %v63
    %v66 = vpop.permute.xlu0 %65
    %vm67 = vcmp.eq.s32.totalorder %v62, %v66
    %v68 = vsel %vm67, 0.9, 0.003125
    %v69 = vld [vmem:[#allocation7] sm:$0xff]
    %vm70 = vcmp.ne.s32.totalorder %v69, 0
    %vm71 = vcmp.ge.s32.totalorder %v62, 32
    %v72 = vsel %vm70, 1, 0
    %73 = vset.pattern.permute.xlu0 0
    %74 = vperm.xlu0 %73, %v72
    %v75 = vpop.permute.xlu0 %74
    %vm76 = vcmp.eq.s32.totalorder %v75, 1
    %vm77 = vmor %vm76, %vm71
    %v78 = vmul.f32 %v68, %v60
    %v79 = vsel %vm77, 0.0, %v78
    %80 = vst [vmem:[#allocation8] sm:$0xff] %v79
    // Predicated region
    $region26: #{label_smoothing_loss.1} parent=1 // pred_check
      _
    $region27: #{label_smoothing_loss.1} parent=1 // pred_check_branch
      %82 = sbr.rel (0) target = $region29
    $region28: #{label_smoothing_loss.1} parent=1 // pred_region
      %s84 = ssub.s32 128, 128
      %85 = vsyncadd [#allocation4], %s84
      %s87 = sshll.u32 [#allocation8], 4
      %s88 = int_to_ptr.vmem [resolvable:$true] %s87
      %90 = dma.vmem_to_hbm [thread:$0]  %s88, 128, %s3, [#allocation4]
    $region29: #{label_smoothing_loss.1} parent=1 // pred_fallthru
      _
    // Predicated region
    $region30: #{label_smoothing_loss.1} parent=1 // pred_check
      _
    $region31: #{label_smoothing_loss.1} parent=1 // pred_check_branch
      %92 = sbr.rel (0) target = $region33
    $region32: #{label_smoothing_loss.1} parent=1 // pred_region
      %93 = dma.done [#allocation4], 128
    $region33: #{label_smoothing_loss.1} parent=1 // pred_fallthru
      _
    %94 = vsyncpa [#allocation3], 1
    %95 = vsyncpa [#allocation6], 1
    %96 = vsyncpa [#allocation4], 1

</llo_original>
